<compile_context>
chip_gen: v5e
topology: v5e:2x2
jax: 0.10.0
libtpu: 0.0.40
codegen_flags: <defaults>
</compile_context>

<pallas_src>
import functools

import numpy as np

import jax
import jax.numpy as jnp
from jax import lax
from jax.experimental import pallas as pl
from jax.experimental.pallas import tpu as pltpu


def _round_up(x, m):
    return (x + m - 1) // m * m


def _fused_conv_kernel(*refs, kh, kw, wp, mo, apply_prelu):
    """One (submodel, batch) grid step.  C = Cin_max, COUTP = round_up(Cout,8).

    x_ref : (1, 1, C, Mp)         flat zero-padded input image, bf16
    w_ref : (1, kh*kw, COUTP, C)  per-tap weights, bf16
    b_ref : (1, COUTP, 1)         bias, f32
    a_ref : (1, COUTP, 1)         PReLU slope, f32 (only present when PReLU)
    o_ref : (1, 1, COUTP, Mo)     flat output (NC * Ho*Wp layout), bf16
    """
    if apply_prelu:
        x_ref, w_ref, b_ref, a_ref, o_ref = refs
    else:
        x_ref, w_ref, b_ref, o_ref = refs
        a_ref = None

    acc = None
    for i in range(kh):
        for j in range(kw):
            off = i * wp + j                              # static flat tap shift
            slab = x_ref[0, 0, :, off:off + mo]           # (C, Mo) bf16
            w_t = w_ref[0, i * kw + j]                    # (COUTP, C) bf16
            d = jnp.dot(w_t, slab, preferred_element_type=jnp.float32)
            acc = d if acc is None else acc + d
    acc = acc + b_ref[0]                                  # (COUTP, 1) broadcast
    if apply_prelu:
        acc = jnp.where(acc > 0, acc, a_ref[0] * acc)
    o_ref[0, 0] = acc.astype(o_ref.dtype)


@functools.partial(jax.jit, static_argnames=("kh", "kw", "ph", "pw", "apply_prelu"))
def _fused_forward(x, w_taps, bias, alpha, *, kh, kw, ph, pw, apply_prelu):
    """x: (S, N, Cin_max, H, W) bf16 -- all submodels stacked, NCHW each."""
    S, N, C, H, W = x.shape
    KK = w_taps.shape[1]
    coutp = w_taps.shape[2]

    hp, wp = H + 2 * ph, W + 2 * pw
    ho, wo = hp - kh + 1, wp - kw + 1            # exact PyTorch stride-1 output
    mo = ho * wp                                 # flat output rows (last kw-1 cols
                                                 # of each row are garbage, cropped later)
    # one extra zero row so flat tap shifts never run past the buffer end
    xpad = jnp.pad(x, ((0, 0), (0, 0), (0, 0), (ph, ph + 1), (pw, pw)))
    mp = (hp + 1) * wp
    xflat = xpad.reshape(S, N, C, mp)            # contiguous merge -> free reshape

    kern = functools.partial(_fused_conv_kernel, kh=kh, kw=kw, wp=wp, mo=mo,
                             apply_prelu=apply_prelu)

    in_arrays = [xflat, w_taps, bias]
    in_specs = [
        pl.BlockSpec((1, 1, C, mp), lambda s, n: (s, n, 0, 0)),
        pl.BlockSpec((1, KK, coutp, C), lambda s, n: (s, 0, 0, 0)),
        pl.BlockSpec((1, coutp, 1), lambda s, n: (s, 0, 0)),
    ]
    if apply_prelu:
        in_arrays.append(alpha)
        in_specs.append(pl.BlockSpec((1, coutp, 1), lambda s, n: (s, 0, 0)))

    out = pl.pallas_call(
        kern,
        out_shape=jax.ShapeDtypeStruct((S, N, coutp, mo), jnp.bfloat16),
        grid_spec=pltpu.PrefetchScalarGridSpec(
            num_scalar_prefetch=0,
            grid=(S, N),
            in_specs=in_specs,
            out_specs=pl.BlockSpec((1, 1, coutp, mo), lambda s, n: (s, n, 0, 0)),
        ),
        compiler_params=pltpu.CompilerParams(
            dimension_semantics=("parallel", "parallel")),
    )(*in_arrays)

    # Already NCHW up to the per-submodel channel / width crop.
    return out.reshape(S, N, coutp, ho, wp)


class FusedLayerPallas:
    """JAX/Pallas equivalent of the PyTorch FusedLayer ('Conv2dBiasPReLU' and
    'Conv2dBias' modes).  forward() keeps the list-in / list-out NCHW (f32)
    contract.  All submodels are fused into ONE pallas_call."""

    def __init__(self, channel_cfgs, kernel_size=3, mode="Conv2dBiasPReLU", seed=0):
        assert mode in ("Conv2dBiasPReLU", "Conv2dBias"), mode
        self.module_name = mode
        self.num_submodels = len(channel_cfgs)
        k = self.kernel_size = int(kernel_size)
        self.pad = (k - 1) // 2                      # PyTorch padding=(k-1)//2
        self.couts = [int(c) for (_, c) in channel_cfgs]
        self.cin_max = max(int(c) for (c, _) in channel_cfgs)
        self.coutp = _round_up(max(self.couts), 8)   # sublane pad only (NOT 128)

        S = self.num_submodels
        self.params = []                             # raw per-submodel (w, b, a)
        wt = np.zeros((S, k * k, self.coutp, self.cin_max), np.float32)
        bs = np.zeros((S, self.coutp, 1), np.float32)
        al = np.ones((S, self.coutp, 1), np.float32)
        key = jax.random.PRNGKey(seed)
        for s, (cin, cout) in enumerate(channel_cfgs):
            key, kw_, kb_, ka_ = jax.random.split(key, 4)
            w = 0.1 * jax.random.normal(kw_, (k, k, cin, cout), jnp.float32)  # HWIO
            b = 0.1 * jax.random.normal(kb_, (cout,), jnp.float32)
            a = 0.25 + 0.01 * jax.random.normal(ka_, (cout,), jnp.float32)
            self.params.append((w, b, a))
            wnp = np.asarray(w)
            for i in range(k):
                for j in range(k):
                    wt[s, i * k + j, :cout, :cin] = wnp[i, j].T               # (cout, cin)
            bs[s, :cout, 0] = np.asarray(b)
            al[s, :cout, 0] = np.asarray(a)
        # Folded per-tap parameters, prepared ONCE (not in the hot path).
        self.w_taps = jnp.asarray(wt, jnp.bfloat16)   # (S, k*k, COUTP, Cin_max)
        self.bias = jnp.asarray(bs, jnp.float32)      # (S, COUTP, 1)
        self.alpha = jnp.asarray(al, jnp.float32)     # (S, COUTP, 1)

    def forward(self, inputs_nchw):
        assert len(inputs_nchw) == self.num_submodels
        N, _, H, W = inputs_nchw[0].shape
        xs = []
        for x in inputs_nchw:
            n, c, h, w = x.shape
            # TODO(synk): ragged per-submodel batch sizes not supported.
            assert (n, h, w) == (N, H, W), "all submodel inputs must share (N, H, W)"
            x = x.astype(jnp.bfloat16)               # cast BEFORE pad/stack
            if c < self.cin_max:
                x = jnp.pad(x, ((0, 0), (0, self.cin_max - c), (0, 0), (0, 0)))
            xs.append(x)
        x = jnp.stack(xs, axis=0)                    # (S, N, Cin_max, H, W) bf16
        apply_prelu = self.module_name == "Conv2dBiasPReLU"
        out = _fused_forward(
            x, self.w_taps, self.bias, self.alpha if apply_prelu else None,
            kh=self.kernel_size, kw=self.kernel_size, ph=self.pad, pw=self.pad,
            apply_prelu=apply_prelu,
        )                                            # (S, N, COUTP, Ho, Wp) bf16
        ho = H + 2 * self.pad - self.kernel_size + 1
        wo = W + 2 * self.pad - self.kernel_size + 1
        # Per-submodel channel / width crop; cast back to f32 to keep the contract.
        return [out[i, :, :c, :ho, :wo].astype(jnp.float32)
                for i, c in enumerate(self.couts)]

    __call__ = forward


def _reference(x_nchw, w, b, a, pad, apply_prelu):
    """Pure-JAX reference: Conv2d(stride 1, pad=(k-1)//2) + bias [+ PReLU]."""
    x = jnp.transpose(x_nchw, (0, 2, 3, 1))
    y = lax.conv_general_dilated(
        x, w, window_strides=(1, 1), padding=((pad, pad), (pad, pad)),
        dimension_numbers=("NHWC", "HWIO", "NHWC"),
        precision=lax.Precision.HIGHEST)
    y = y + b[None, None, None, :]
    if apply_prelu:
        y = jnp.where(y > 0, y, a[None, None, None, :] * y)
    return jnp.transpose(y, (0, 3, 1, 2))


if __name__ == "__main__":
    key = jax.random.PRNGKey(0)
    batch, cin, hw = 2, 4, 16
    channel_cfgs = [(cin, 8), (cin, 12), (cin, 16)]      # 3 ClassSR-style branches

    inputs = []
    for _ in channel_cfgs:
        key, sub = jax.random.split(key)
        inputs.append(jax.random.normal(sub, (batch, cin, hw, hw), jnp.float32))

    for mode in ("Conv2dBiasPReLU", "Conv2dBias"):
        layer = FusedLayerPallas(channel_cfgs, kernel_size=3, mode=mode, seed=0)
        outs = layer(inputs)
        outs = [jax.block_until_ready(o) for o in outs]

        # shapes match the implied output_shapes list
        for (c_in, c_out), o in zip(channel_cfgs, outs):
            assert o.shape == (batch, c_out, hw, hw), o.shape

        # numerical check vs pure-JAX reference (bf16 operands/output -> loose tol)
        for (w, b, a), x, o in zip(layer.params, inputs, outs):
            ref = _reference(x, w, b, a, layer.pad, mode == "Conv2dBiasPReLU")
            np.testing.assert_allclose(np.asarray(o), np.asarray(ref),
                                       rtol=5e-2, atol=5e-2)

    print("KERNEL_OK")
</pallas_src>

<mosaic_0001>
module attributes {stable_mosaic.version = 11 : i64} {
  func.func @_fused_conv_kernel(%arg0: i32, %arg1: i32, %arg2: memref<1x1x4x342xbf16, #tpu.memory_space<vmem>>, %arg3: memref<1x9x16x4xbf16, #tpu.memory_space<vmem>>, %arg4: memref<1x16x1xf32, #tpu.memory_space<vmem>>, %arg5: memref<1x16x1xf32, #tpu.memory_space<vmem>>, %arg6: memref<1x1x16x288xbf16, #tpu.memory_space<vmem>>) attributes {dimension_semantics = [#tpu.dimension_semantics<parallel>, #tpu.dimension_semantics<parallel>], iteration_bounds = array<i64: 3, 2>, scalar_prefetch = 0 : i64, scratch_operands = 0 : i64, tpu.core_type = #tpu.core_type<tc>, window_params = [{transform_indices = @transform_0, window_bounds = array<i64: 1, 1, 4, 342>}, {transform_indices = @transform_1, window_bounds = array<i64: 1, 9, 16, 4>}, {transform_indices = @transform_2, window_bounds = array<i64: 1, 16, 1>}, {transform_indices = @transform_3, window_bounds = array<i64: 1, 16, 1>}, {transform_indices = @transform_4, window_bounds = array<i64: 1, 1, 16, 288>}]} {
    %c0 = arith.constant 0 : index
    %c0_0 = arith.constant 0 : index
    %c0_1 = arith.constant 0 : index
    %c0_2 = arith.constant 0 : index
    %0 = vector.load %arg2[%c0, %c0_0, %c0_1, %c0_2] : memref<1x1x4x342xbf16, #tpu.memory_space<vmem>>, vector<1x1x4x288xbf16>
    %1 = vector.shape_cast %0 : vector<1x1x4x288xbf16> to vector<4x288xbf16>
    %c0_3 = arith.constant 0 : index
    %c0_4 = arith.constant 0 : index
    %c0_5 = arith.constant 0 : index
    %c0_6 = arith.constant 0 : index
    %2 = vector.load %arg3[%c0_3, %c0_4, %c0_5, %c0_6] : memref<1x9x16x4xbf16, #tpu.memory_space<vmem>>, vector<1x1x16x4xbf16>
    %3 = vector.shape_cast %2 : vector<1x1x16x4xbf16> to vector<16x4xbf16>
    %cst = arith.constant dense<0.000000e+00> : vector<16x288xf32>
    %4 = tpu.matmul %3, %1, %cst {dimension_numbers = #tpu.dot_dimension_numbers<[1], [0], [0], [1], [0, 0, 1, 1], [], []>} : vector<16x4xbf16>, vector<4x288xbf16>, vector<16x288xf32> -> vector<16x288xf32>
    %c0_7 = arith.constant 0 : index
    %c0_8 = arith.constant 0 : index
    %c0_9 = arith.constant 0 : index
    %c1 = arith.constant 1 : index
    %5 = vector.load %arg2[%c0_7, %c0_8, %c0_9, %c1] : memref<1x1x4x342xbf16, #tpu.memory_space<vmem>>, vector<1x1x4x288xbf16>
    %6 = vector.shape_cast %5 : vector<1x1x4x288xbf16> to vector<4x288xbf16>
    %c0_10 = arith.constant 0 : index
    %c1_11 = arith.constant 1 : index
    %c0_12 = arith.constant 0 : index
    %c0_13 = arith.constant 0 : index
    %7 = vector.load %arg3[%c0_10, %c1_11, %c0_12, %c0_13] : memref<1x9x16x4xbf16, #tpu.memory_space<vmem>>, vector<1x1x16x4xbf16>
    %8 = vector.shape_cast %7 : vector<1x1x16x4xbf16> to vector<16x4xbf16>
    %cst_14 = arith.constant dense<0.000000e+00> : vector<16x288xf32>
    %9 = tpu.matmul %8, %6, %cst_14 {dimension_numbers = #tpu.dot_dimension_numbers<[1], [0], [0], [1], [0, 0, 1, 1], [], []>} : vector<16x4xbf16>, vector<4x288xbf16>, vector<16x288xf32> -> vector<16x288xf32>
    %10 = arith.addf %4, %9 : vector<16x288xf32>
    %c0_15 = arith.constant 0 : index
    %c0_16 = arith.constant 0 : index
    %c0_17 = arith.constant 0 : index
    %c2 = arith.constant 2 : index
    %11 = vector.load %arg2[%c0_15, %c0_16, %c0_17, %c2] : memref<1x1x4x342xbf16, #tpu.memory_space<vmem>>, vector<1x1x4x288xbf16>
    %12 = vector.shape_cast %11 : vector<1x1x4x288xbf16> to vector<4x288xbf16>
    %c0_18 = arith.constant 0 : index
    %c2_19 = arith.constant 2 : index
    %c0_20 = arith.constant 0 : index
    %c0_21 = arith.constant 0 : index
    %13 = vector.load %arg3[%c0_18, %c2_19, %c0_20, %c0_21] : memref<1x9x16x4xbf16, #tpu.memory_space<vmem>>, vector<1x1x16x4xbf16>
    %14 = vector.shape_cast %13 : vector<1x1x16x4xbf16> to vector<16x4xbf16>
    %cst_22 = arith.constant dense<0.000000e+00> : vector<16x288xf32>
    %15 = tpu.matmul %14, %12, %cst_22 {dimension_numbers = #tpu.dot_dimension_numbers<[1], [0], [0], [1], [0, 0, 1, 1], [], []>} : vector<16x4xbf16>, vector<4x288xbf16>, vector<16x288xf32> -> vector<16x288xf32>
    %16 = arith.addf %10, %15 : vector<16x288xf32>
    %c0_23 = arith.constant 0 : index
    %c0_24 = arith.constant 0 : index
    %c0_25 = arith.constant 0 : index
    %c18 = arith.constant 18 : index
    %17 = vector.load %arg2[%c0_23, %c0_24, %c0_25, %c18] : memref<1x1x4x342xbf16, #tpu.memory_space<vmem>>, vector<1x1x4x288xbf16>
    %18 = vector.shape_cast %17 : vector<1x1x4x288xbf16> to vector<4x288xbf16>
    %c0_26 = arith.constant 0 : index
    %c3 = arith.constant 3 : index
    %c0_27 = arith.constant 0 : index
    %c0_28 = arith.constant 0 : index
    %19 = vector.load %arg3[%c0_26, %c3, %c0_27, %c0_28] : memref<1x9x16x4xbf16, #tpu.memory_space<vmem>>, vector<1x1x16x4xbf16>
    %20 = vector.shape_cast %19 : vector<1x1x16x4xbf16> to vector<16x4xbf16>
    %cst_29 = arith.constant dense<0.000000e+00> : vector<16x288xf32>
    %21 = tpu.matmul %20, %18, %cst_29 {dimension_numbers = #tpu.dot_dimension_numbers<[1], [0], [0], [1], [0, 0, 1, 1], [], []>} : vector<16x4xbf16>, vector<4x288xbf16>, vector<16x288xf32> -> vector<16x288xf32>
    %22 = arith.addf %16, %21 : vector<16x288xf32>
    %c0_30 = arith.constant 0 : index
    %c0_31 = arith.constant 0 : index
    %c0_32 = arith.constant 0 : index
    %c19 = arith.constant 19 : index
    %23 = vector.load %arg2[%c0_30, %c0_31, %c0_32, %c19] : memref<1x1x4x342xbf16, #tpu.memory_space<vmem>>, vector<1x1x4x288xbf16>
    %24 = vector.shape_cast %23 : vector<1x1x4x288xbf16> to vector<4x288xbf16>
    %c0_33 = arith.constant 0 : index
    %c4 = arith.constant 4 : index
    %c0_34 = arith.constant 0 : index
    %c0_35 = arith.constant 0 : index
    %25 = vector.load %arg3[%c0_33, %c4, %c0_34, %c0_35] : memref<1x9x16x4xbf16, #tpu.memory_space<vmem>>, vector<1x1x16x4xbf16>
    %26 = vector.shape_cast %25 : vector<1x1x16x4xbf16> to vector<16x4xbf16>
    %cst_36 = arith.constant dense<0.000000e+00> : vector<16x288xf32>
    %27 = tpu.matmul %26, %24, %cst_36 {dimension_numbers = #tpu.dot_dimension_numbers<[1], [0], [0], [1], [0, 0, 1, 1], [], []>} : vector<16x4xbf16>, vector<4x288xbf16>, vector<16x288xf32> -> vector<16x288xf32>
    %28 = arith.addf %22, %27 : vector<16x288xf32>
    %c0_37 = arith.constant 0 : index
    %c0_38 = arith.constant 0 : index
    %c0_39 = arith.constant 0 : index
    %c20 = arith.constant 20 : index
    %29 = vector.load %arg2[%c0_37, %c0_38, %c0_39, %c20] : memref<1x1x4x342xbf16, #tpu.memory_space<vmem>>, vector<1x1x4x288xbf16>
    %30 = vector.shape_cast %29 : vector<1x1x4x288xbf16> to vector<4x288xbf16>
    %c0_40 = arith.constant 0 : index
    %c5 = arith.constant 5 : index
    %c0_41 = arith.constant 0 : index
    %c0_42 = arith.constant 0 : index
    %31 = vector.load %arg3[%c0_40, %c5, %c0_41, %c0_42] : memref<1x9x16x4xbf16, #tpu.memory_space<vmem>>, vector<1x1x16x4xbf16>
    %32 = vector.shape_cast %31 : vector<1x1x16x4xbf16> to vector<16x4xbf16>
    %cst_43 = arith.constant dense<0.000000e+00> : vector<16x288xf32>
    %33 = tpu.matmul %32, %30, %cst_43 {dimension_numbers = #tpu.dot_dimension_numbers<[1], [0], [0], [1], [0, 0, 1, 1], [], []>} : vector<16x4xbf16>, vector<4x288xbf16>, vector<16x288xf32> -> vector<16x288xf32>
    %34 = arith.addf %28, %33 : vector<16x288xf32>
    %c0_44 = arith.constant 0 : index
    %c0_45 = arith.constant 0 : index
    %c0_46 = arith.constant 0 : index
    %c36 = arith.constant 36 : index
    %35 = vector.load %arg2[%c0_44, %c0_45, %c0_46, %c36] : memref<1x1x4x342xbf16, #tpu.memory_space<vmem>>, vector<1x1x4x288xbf16>
    %36 = vector.shape_cast %35 : vector<1x1x4x288xbf16> to vector<4x288xbf16>
    %c0_47 = arith.constant 0 : index
    %c6 = arith.constant 6 : index
    %c0_48 = arith.constant 0 : index
    %c0_49 = arith.constant 0 : index
    %37 = vector.load %arg3[%c0_47, %c6, %c0_48, %c0_49] : memref<1x9x16x4xbf16, #tpu.memory_space<vmem>>, vector<1x1x16x4xbf16>
    %38 = vector.shape_cast %37 : vector<1x1x16x4xbf16> to vector<16x4xbf16>
    %cst_50 = arith.constant dense<0.000000e+00> : vector<16x288xf32>
    %39 = tpu.matmul %38, %36, %cst_50 {dimension_numbers = #tpu.dot_dimension_numbers<[1], [0], [0], [1], [0, 0, 1, 1], [], []>} : vector<16x4xbf16>, vector<4x288xbf16>, vector<16x288xf32> -> vector<16x288xf32>
    %40 = arith.addf %34, %39 : vector<16x288xf32>
    %c0_51 = arith.constant 0 : index
    %c0_52 = arith.constant 0 : index
    %c0_53 = arith.constant 0 : index
    %c37 = arith.constant 37 : index
    %41 = vector.load %arg2[%c0_51, %c0_52, %c0_53, %c37] : memref<1x1x4x342xbf16, #tpu.memory_space<vmem>>, vector<1x1x4x288xbf16>
    %42 = vector.shape_cast %41 : vector<1x1x4x288xbf16> to vector<4x288xbf16>
    %c0_54 = arith.constant 0 : index
    %c7 = arith.constant 7 : index
    %c0_55 = arith.constant 0 : index
    %c0_56 = arith.constant 0 : index
    %43 = vector.load %arg3[%c0_54, %c7, %c0_55, %c0_56] : memref<1x9x16x4xbf16, #tpu.memory_space<vmem>>, vector<1x1x16x4xbf16>
    %44 = vector.shape_cast %43 : vector<1x1x16x4xbf16> to vector<16x4xbf16>
    %cst_57 = arith.constant dense<0.000000e+00> : vector<16x288xf32>
    %45 = tpu.matmul %44, %42, %cst_57 {dimension_numbers = #tpu.dot_dimension_numbers<[1], [0], [0], [1], [0, 0, 1, 1], [], []>} : vector<16x4xbf16>, vector<4x288xbf16>, vector<16x288xf32> -> vector<16x288xf32>
    %46 = arith.addf %40, %45 : vector<16x288xf32>
    %c0_58 = arith.constant 0 : index
    %c0_59 = arith.constant 0 : index
    %c0_60 = arith.constant 0 : index
    %c38 = arith.constant 38 : index
    %47 = vector.load %arg2[%c0_58, %c0_59, %c0_60, %c38] : memref<1x1x4x342xbf16, #tpu.memory_space<vmem>>, vector<1x1x4x288xbf16>
    %48 = vector.shape_cast %47 : vector<1x1x4x288xbf16> to vector<4x288xbf16>
    %c0_61 = arith.constant 0 : index
    %c8 = arith.constant 8 : index
    %c0_62 = arith.constant 0 : index
    %c0_63 = arith.constant 0 : index
    %49 = vector.load %arg3[%c0_61, %c8, %c0_62, %c0_63] : memref<1x9x16x4xbf16, #tpu.memory_space<vmem>>, vector<1x1x16x4xbf16>
    %50 = vector.shape_cast %49 : vector<1x1x16x4xbf16> to vector<16x4xbf16>
    %cst_64 = arith.constant dense<0.000000e+00> : vector<16x288xf32>
    %51 = tpu.matmul %50, %48, %cst_64 {dimension_numbers = #tpu.dot_dimension_numbers<[1], [0], [0], [1], [0, 0, 1, 1], [], []>} : vector<16x4xbf16>, vector<4x288xbf16>, vector<16x288xf32> -> vector<16x288xf32>
    %52 = arith.addf %46, %51 : vector<16x288xf32>
    %c0_65 = arith.constant 0 : index
    %c0_66 = arith.constant 0 : index
    %c0_67 = arith.constant 0 : index
    %53 = vector.load %arg4[%c0_65, %c0_66, %c0_67] : memref<1x16x1xf32, #tpu.memory_space<vmem>>, vector<1x16x1xf32>
    %54 = vector.shape_cast %53 : vector<1x16x1xf32> to vector<16x1xf32>
    %55 = vector.broadcast %54 : vector<16x1xf32> to vector<16x288xf32>
    %56 = arith.addf %52, %55 : vector<16x288xf32>
    %cst_68 = arith.constant 0.000000e+00 : f32
    %57 = vector.broadcast %cst_68 : f32 to vector<16x288xf32>
    %58 = arith.cmpf ogt, %56, %57 : vector<16x288xf32>
    %c0_69 = arith.constant 0 : index
    %c0_70 = arith.constant 0 : index
    %c0_71 = arith.constant 0 : index
    %59 = vector.load %arg5[%c0_69, %c0_70, %c0_71] : memref<1x16x1xf32, #tpu.memory_space<vmem>>, vector<1x16x1xf32>
    %60 = vector.shape_cast %59 : vector<1x16x1xf32> to vector<16x1xf32>
    %61 = vector.broadcast %60 : vector<16x1xf32> to vector<16x288xf32>
    %62 = arith.mulf %61, %56 : vector<16x288xf32>
    %63 = arith.select %58, %56, %62 : vector<16x288xi1>, vector<16x288xf32>
    %64 = arith.truncf %63 : vector<16x288xf32> to vector<16x288xbf16>
    %c0_72 = arith.constant 0 : index
    %c0_73 = arith.constant 0 : index
    %c0_74 = arith.constant 0 : index
    %c0_75 = arith.constant 0 : index
    %65 = vector.load %arg6[%c0_72, %c0_73, %c0_74, %c0_75] : memref<1x1x16x288xbf16, #tpu.memory_space<vmem>>, vector<1x1x16x288xbf16>
    %66 = vector.shape_cast %65 : vector<1x1x16x288xbf16> to vector<16x288xbf16>
    %67 = vector.shape_cast %64 : vector<16x288xbf16> to vector<1x1x16x288xbf16>
    tpu.vector_store %arg6[%c0_72, %c0_73, %c0_74, %c0_75], %67 {strides = array<i32>} : memref<1x1x16x288xbf16, #tpu.memory_space<vmem>>, vector<1x1x16x288xbf16>,
    return
  }
  func.func @transform_0(%arg0: i32, %arg1: i32) -> (i32, i32, i32, i32) {
    %c0_i32 = arith.constant 0 : i32
    %c0_i32_0 = arith.constant 0 : i32
    %c0_i32_1 = arith.constant 0 : i32
    return %arg0, %arg1, %c0_i32, %c0_i32_0 : i32, i32, i32, i32
  }
  func.func @transform_1(%arg0: i32, %arg1: i32) -> (i32, i32, i32, i32) {
    %c0_i32 = arith.constant 0 : i32
    %c0_i32_0 = arith.constant 0 : i32
    %c0_i32_1 = arith.constant 0 : i32
    %c0_i32_2 = arith.constant 0 : i32
    return %arg0, %c0_i32, %c0_i32_0, %c0_i32_1 : i32, i32, i32, i32
  }
  func.func @transform_2(%arg0: i32, %arg1: i32) -> (i32, i32, i32) {
    %c0_i32 = arith.constant 0 : i32
    %c0_i32_0 = arith.constant 0 : i32
    %c0_i32_1 = arith.constant 0 : i32
    return %arg0, %c0_i32, %c0_i32_0 : i32, i32, i32
  }
  func.func @transform_3(%arg0: i32, %arg1: i32) -> (i32, i32, i32) {
    %c0_i32 = arith.constant 0 : i32
    %c0_i32_0 = arith.constant 0 : i32
    %c0_i32_1 = arith.constant 0 : i32
    return %arg0, %c0_i32, %c0_i32_0 : i32, i32, i32
  }
  func.func @transform_4(%arg0: i32, %arg1: i32) -> (i32, i32, i32, i32) {
    %c0_i32 = arith.constant 0 : i32
    %c0_i32_0 = arith.constant 0 : i32
    %c0_i32_1 = arith.constant 0 : i32
    return %arg0, %arg1, %c0_i32, %c0_i32_0 : i32, i32, i32, i32
  }
}

</mosaic_0001>

<llo_original>
// kernel: _fused_forward.1
$region0: #{_fused_forward.1}
  #allocation0 [shape = 'u32[]', space=smem, size = 0x4, offset = 0x4, fixed_abs, tag = 'smem constant byte address 0x4 - core index']
  #allocation1 [shape = 'u32[72,128]{1,0:T(1,128)}', space=vmem, size = 0x9000, scoped, tag = 'internal scratch']
  %s0 = inlined_call_operand.vmem [shape: bf16[3,2,4,342], index: 0, kind: input, shape index: {}]
  %s1 = inlined_call_operand.vmem [shape: bf16[3,9,16,4], index: 1, kind: input, shape index: {}]
  %s2 = inlined_call_operand.vmem [shape: f32[3,16,1], index: 2, kind: input, shape index: {}]
  %s3 = inlined_call_operand.vmem [shape: f32[3,16,1], index: 3, kind: input, shape index: {}]
  %s4 = inlined_call_operand.vmem [shape: bf16[3,2,16,288], index: 4, kind: output, shape index: {}]
  %s5 = sld [smem:[#allocation0]]
  $region49: #{_fused_forward.1} parent=0
    _
  %s7 = ssub.s32 1, %s5
  %s8 = scalar_select 0, %s7, %s5
  loop: start=0, step=1, limit=8
  $region2: #{_fused_forward.1} parent=0 // loop_pre_header
    _
  $region3: #{_fused_forward.1} parent=0 // loop_header
    %s10 = sphi 0, %s14
    %p11 = scmp.ge.s32.totalorder %s10, 8
    %s17 = sphi 0, %s29
    %s18 = sphi 0, %s25
    %s19 = sphi 0, %s17
    %s20 = sphi 0, %s18
    %s21 = sphi 0, %s19
    %s22 = sphi 0, %s20
    %s34 = sphi 0, %s36
    %s37 = sphi 0, %s34
    %s38 = sphi 0, %s37
    %s54 = sphi 0, %s38
    %s60 = sphi 0, %s62
    %s63 = sphi 0, %s60
    %s64 = sphi 0, %s63
    %s80 = sphi 0, %s64
    %s86 = sphi 0, %s88
    %s89 = sphi 0, %s86
    %s90 = sphi 0, %s89
    %s106 = sphi 0, %s90
    %s112 = sphi 0, %s114
    %s115 = sphi 0, %s112
    %s116 = sphi 0, %s115
    %s132 = sphi 0, %s116
    %s140 = sphi 0, %s142
    %s143 = sphi 0, %s140
    %s144 = sphi 0, %s143
    %s160 = sphi 0, %s144
  $region4: #{_fused_forward.1} parent=0 // loop_header_branch
    %13 = sbr.rel (%p11) target = $region8
  $region5: #{_fused_forward.1} parent=0 // loop_body
    %s15 = ssub.s32 %s10, 1
    %s16 = ssub.s32 %s10, 2
    %s23 = sadd.s32 1, %s18
    %p24 = scmp.ge.s32.totalorder %s23, 2
    %s25 = scalar_select %p24, 0, %s23
    %s26 = sadd.s32 1, %s17
    %s27 = scalar_select %p24, %s26, %s17
    %p28 = scmp.ge.s32.totalorder %s27, 3
    %s29 = scalar_select %p28, 0, %s27
    %s30 = ssub.s32 %s17, %s29
    %s31 = ssub.s32 %s18, %s25
    %s32 = sor.u32 %s30, %s31
    %p33 = scmp.eq.s32.totalorder %s32, 0
    %s35 = sadd.s32 %s34, 1
    %s36 = scalar_select %p33, %s34, %s35
    %p39 = pneg %p33
    %p40 = scmp.eq.s32.totalorder %s10, 5
    %p41 = por %p39, %p40
    %p42 = scmp.ne.s32.totalorder %s34, %s37
    %p43 = scmp.eq.s32.totalorder %s10, 0
    %p44 = por %p42, %p43
    %p45 = scmp.ne.s32.totalorder %s34, %s37
    %p46 = scmp.eq.s32.totalorder %s15, 5
    %p47 = por %p45, %p46
    %p48 = scmp.ne.s32.totalorder %s37, %s38
    %p49 = scmp.eq.s32.totalorder %s15, 0
    %p50 = por %p48, %p49
    %p51 = scmp.ne.s32.totalorder %s37, %s38
    %p52 = scmp.eq.s32.totalorder %s16, 5
    %p53 = por %p51, %p52
    %p55 = scmp.ne.s32.totalorder %s38, %s54
    %p56 = scmp.eq.s32.totalorder %s16, 0
    %p57 = por %p55, %p56
    %s58 = ssub.s32 %s17, %s29
    %p59 = scmp.eq.s32.totalorder %s58, 0
    %s61 = sadd.s32 %s60, 1
    %s62 = scalar_select %p59, %s60, %s61
    %p65 = pneg %p59
    %p66 = scmp.eq.s32.totalorder %s10, 5
    %p67 = por %p65, %p66
    %p68 = scmp.ne.s32.totalorder %s60, %s63
    %p69 = scmp.eq.s32.totalorder %s10, 0
    %p70 = por %p68, %p69
    %p71 = scmp.ne.s32.totalorder %s60, %s63
    %p72 = scmp.eq.s32.totalorder %s15, 5
    %p73 = por %p71, %p72
    %p74 = scmp.ne.s32.totalorder %s63, %s64
    %p75 = scmp.eq.s32.totalorder %s15, 0
    %p76 = por %p74, %p75
    %p77 = scmp.ne.s32.totalorder %s63, %s64
    %p78 = scmp.eq.s32.totalorder %s16, 5
    %p79 = por %p77, %p78
    %p81 = scmp.ne.s32.totalorder %s64, %s80
    %p82 = scmp.eq.s32.totalorder %s16, 0
    %p83 = por %p81, %p82
    %s84 = ssub.s32 %s17, %s29
    %p85 = scmp.eq.s32.totalorder %s84, 0
    %s87 = sadd.s32 %s86, 1
    %s88 = scalar_select %p85, %s86, %s87
    %p91 = pneg %p85
    %p92 = scmp.eq.s32.totalorder %s10, 5
    %p93 = por %p91, %p92
    %p94 = scmp.ne.s32.totalorder %s86, %s89
    %p95 = scmp.eq.s32.totalorder %s10, 0
    %p96 = por %p94, %p95
    %p97 = scmp.ne.s32.totalorder %s86, %s89
    %p98 = scmp.eq.s32.totalorder %s15, 5
    %p99 = por %p97, %p98
    %p100 = scmp.ne.s32.totalorder %s89, %s90
    %p101 = scmp.eq.s32.totalorder %s15, 0
    %p102 = por %p100, %p101
    %p103 = scmp.ne.s32.totalorder %s89, %s90
    %p104 = scmp.eq.s32.totalorder %s16, 5
    %p105 = por %p103, %p104
    %p107 = scmp.ne.s32.totalorder %s90, %s106
    %p108 = scmp.eq.s32.totalorder %s16, 0
    %p109 = por %p107, %p108
    %s110 = ssub.s32 %s17, %s29
    %p111 = scmp.eq.s32.totalorder %s110, 0
    %s113 = sadd.s32 %s112, 1
    %s114 = scalar_select %p111, %s112, %s113
    %p117 = pneg %p111
    %p118 = scmp.eq.s32.totalorder %s10, 5
    %p119 = por %p117, %p118
    %p120 = scmp.ne.s32.totalorder %s112, %s115
    %p121 = scmp.eq.s32.totalorder %s10, 0
    %p122 = por %p120, %p121
    %p123 = scmp.ne.s32.totalorder %s112, %s115
    %p124 = scmp.eq.s32.totalorder %s15, 5
    %p125 = por %p123, %p124
    %p126 = scmp.ne.s32.totalorder %s115, %s116
    %p127 = scmp.eq.s32.totalorder %s15, 0
    %p128 = por %p126, %p127
    %p129 = scmp.ne.s32.totalorder %s115, %s116
    %p130 = scmp.eq.s32.totalorder %s16, 5
    %p131 = por %p129, %p130
    %p133 = scmp.ne.s32.totalorder %s116, %s132
    %p134 = scmp.eq.s32.totalorder %s16, 0
    %p135 = por %p133, %p134
    %s136 = ssub.s32 %s17, %s29
    %s137 = ssub.s32 %s18, %s25
    %s138 = sor.u32 %s136, %s137
    %p139 = scmp.eq.s32.totalorder %s138, 0
    %s141 = sadd.s32 %s140, 1
    %s142 = scalar_select %p139, %s140, %s141
    %p145 = pneg %p139
    %p146 = scmp.eq.s32.totalorder %s10, 5
    %p147 = por %p145, %p146
    %p148 = scmp.ne.s32.totalorder %s140, %s143
    %p149 = scmp.eq.s32.totalorder %s10, 0
    %p150 = por %p148, %p149
    %p151 = scmp.ne.s32.totalorder %s140, %s143
    %p152 = scmp.eq.s32.totalorder %s15, 5
    %p153 = por %p151, %p152
    %p154 = scmp.ne.s32.totalorder %s143, %s144
    %p155 = scmp.eq.s32.totalorder %s15, 0
    %p156 = por %p154, %p155
    %p157 = scmp.ne.s32.totalorder %s143, %s144
    %p158 = scmp.eq.s32.totalorder %s16, 5
    %p159 = por %p157, %p158
    %p161 = scmp.ne.s32.totalorder %s144, %s160
    %p162 = scmp.eq.s32.totalorder %s16, 0
    %p163 = por %p161, %p162
    %p164 = scmp.le.s32.totalorder 1, %s10
    %p165 = scmp.lt.s32.totalorder %s10, 7
    %p166 = pnand %p164, %p165
    %p167 = pneg %p166
    // Predicated region
    $region9: #{_fused_forward.1} parent=5 // pred_check
      _
    $region10: #{_fused_forward.1} parent=5 // pred_check_branch
      %169 = sbr.rel (%p166) target = $region12
    $region11: #{_fused_forward.1} parent=5 // pred_region
      %s170 = ssub.s32 %s10, 1
    $region12: #{_fused_forward.1} parent=5 // pred_fallthru
      _
    %p171 = scmp.lt.s32.totalorder %s10, 6
    // Predicated region
    $region13: #{_fused_forward.1} parent=5 // pred_check
      %p172 = pneg %p171
    $region14: #{_fused_forward.1} parent=5 // pred_check_branch
      %174 = sbr.rel (%p172) target = $region16
    $region15: #{_fused_forward.1} parent=5 // pred_region
      // Predicated region
      $region17: #{_fused_forward.1} parent=15 // pred_check
        %p175 = pneg %p44
      $region18: #{_fused_forward.1} parent=15 // pred_check_branch
        %177 = sbr.rel (%p175) target = $region20
      $region19: #{_fused_forward.1} parent=15 // pred_region
        %p178 = scmp.lt.s32.totalorder %s17, 2
        %s179 = scalar_select %p178, %s17, 2
        %p180 = scmp.lt.s32.totalorder %s18, 1
        %s181 = scalar_select %p180, %s18, 1
        %s182 = smul.addr %s181, 3
        %s183 = smul.addr %s179, 6
        %s184 = sadd.s32 %s182, %s183
        %s185 = smul.addr %s184, 2
        %s186 = scalar_lea.vmem %s0, %s185
      $region20: #{_fused_forward.1} parent=15 // pred_fallthru
        _
      // Predicated region
      $region21: #{_fused_forward.1} parent=15 // pred_check
        %p187 = pneg %p70
      $region22: #{_fused_forward.1} parent=15 // pred_check_branch
        %189 = sbr.rel (%p187) target = $region24
      $region23: #{_fused_forward.1} parent=15 // pred_region
        %p190 = scmp.lt.s32.totalorder %s17, 2
        %s191 = scalar_select %p190, %s17, 2
        %s192 = smul.addr %s191, 18
        %s193 = smul.addr %s192, 4
        %s194 = scalar_lea.vmem %s1, %s193
      $region24: #{_fused_forward.1} parent=15 // pred_fallthru
        _
      // Predicated region
      $region25: #{_fused_forward.1} parent=15 // pred_check
        %p195 = pneg %p96
      $region26: #{_fused_forward.1} parent=15 // pred_check_branch
        %197 = sbr.rel (%p195) target = $region28
      $region27: #{_fused_forward.1} parent=15 // pred_region
        %p198 = scmp.lt.s32.totalorder %s17, 2
        %s199 = scalar_select %p198, %s17, 2
        %s200 = smul.addr %s199, 2
        %s201 = smul.addr %s200, 8
        %s202 = scalar_lea.vmem %s2, %s201
      $region28: #{_fused_forward.1} parent=15 // pred_fallthru
        _
      // Predicated region
      $region29: #{_fused_forward.1} parent=15 // pred_check
        %p203 = pneg %p122
      $region30: #{_fused_forward.1} parent=15 // pred_check_branch
        %205 = sbr.rel (%p203) target = $region32
      $region31: #{_fused_forward.1} parent=15 // pred_region
        %p206 = scmp.lt.s32.totalorder %s17, 2
        %s207 = scalar_select %p206, %s17, 2
        %s208 = smul.addr %s207, 2
        %s209 = smul.addr %s208, 8
        %s210 = scalar_lea.vmem %s3, %s209
      $region32: #{_fused_forward.1} parent=15 // pred_fallthru
        _
    $region16: #{_fused_forward.1} parent=5 // pred_fallthru
      _
    %p211 = scmp.le.s32.totalorder 1, %s10
    %p212 = scmp.lt.s32.totalorder %s10, 7
    %p213 = pnand %p211, %p212
    %p214 = pneg %p213
    // Predicated region
    $region33: #{_fused_forward.1} parent=5 // pred_check
      _
    $region34: #{_fused_forward.1} parent=5 // pred_check_branch
      %216 = sbr.rel (%p213) target = $region36
    $region35: #{_fused_forward.1} parent=5 // pred_region
      %s217 = ssub.s32 %s10, 1
      %p218 = scmp.lt.s32.totalorder %s19, 2
      %s219 = scalar_select %p218, %s19, 2
      %p220 = scmp.lt.s32.totalorder %s20, 1
      %s221 = scalar_select %p220, %s20, 1
      %s222 = smul.addr %s221, 3
      %s223 = smul.addr %s219, 6
      %s224 = sadd.s32 %s222, %s223
      %s225 = smul.addr %s224, 2
      %s226 = scalar_lea.vmem %s0, %s225
      %p227 = pneg %p50
      %p228 = pneg %p47
      %p229 = scmp.lt.s32.totalorder %s19, 2
      %s230 = scalar_select %p229, %s19, 2
      %s231 = smul.addr %s230, 18
      %s232 = smul.addr %s231, 4
      %s233 = scalar_lea.vmem %s1, %s232
      %p234 = pneg %p76
      %p235 = pneg %p73
      %p236 = scmp.lt.s32.totalorder %s19, 2
      %s237 = scalar_select %p236, %s19, 2
      %s238 = smul.addr %s237, 2
      %s239 = smul.addr %s238, 8
      %s240 = scalar_lea.vmem %s2, %s239
      %p241 = pneg %p102
      %p242 = pneg %p99
      %p243 = scmp.lt.s32.totalorder %s19, 2
      %s244 = scalar_select %p243, %s19, 2
      %s245 = smul.addr %s244, 2
      %s246 = smul.addr %s245, 8
      %s247 = scalar_lea.vmem %s3, %s246
      %p248 = pneg %p128
      %p249 = pneg %p125
      %p250 = pneg %p156
      %p251 = pneg %p153
      %p252 = scmp.lt.s32.totalorder %s19, 2
      %s253 = scalar_select %p252, %s19, 2
      %p254 = scmp.lt.s32.totalorder %s20, 1
      %s255 = scalar_select %p254, %s20, 1
      %s256 = smul.addr %s255, 6
      %s257 = smul.addr %s253, 12
      %s258 = sadd.s32 %s256, %s257
      %s259 = smul.addr %s258, 4
      %s260 = scalar_lea.vmem %s4, %s259
      %p261 = scmp.lt.s32.totalorder %s19, 2
      %s262 = scalar_select %p261, %s19, 2
      %p263 = scmp.lt.s32.totalorder %s20, 1
      %s264 = scalar_select %p263, %s20, 1
      %s265 = smul.addr %s264, 3
      %s266 = smul.addr %s262, 6
      %s267 = sadd.s32 %s265, %s266
      %s268 = smul.addr %s267, 2
      %s269 = scalar_lea.vmem %s0, %s268
      %p270 = scmp.lt.s32.totalorder %s19, 2
      %s271 = scalar_select %p270, %s19, 2
      %s272 = smul.addr %s271, 18
      %s273 = smul.addr %s272, 4
      %s274 = scalar_lea.vmem %s1, %s273
      %p275 = scmp.lt.s32.totalorder %s19, 2
      %s276 = scalar_select %p275, %s19, 2
      %s277 = smul.addr %s276, 2
      %s278 = smul.addr %s277, 8
      %s279 = scalar_lea.vmem %s2, %s278
      %p280 = scmp.lt.s32.totalorder %s19, 2
      %s281 = scalar_select %p280, %s19, 2
      %s282 = smul.addr %s281, 2
      %s283 = smul.addr %s282, 8
      %s284 = scalar_lea.vmem %s3, %s283
      %p285 = scmp.lt.s32.totalorder %s19, 2
      %s286 = scalar_select %p285, %s19, 2
      %p287 = scmp.lt.s32.totalorder %s20, 1
      %s288 = scalar_select %p287, %s20, 1
      %s289 = smul.addr %s288, 6
      %s290 = smul.addr %s286, 12
      %s291 = sadd.s32 %s289, %s290
      %s292 = smul.addr %s291, 4
      %s293 = scalar_lea.vmem %s4, %s292
      %v295 = vld [vmem:[%s269] sm:$0x3f]
      %v296 = vld [vmem:[%s274] sm:$0xf]
      %v297 = vld [vmem:[%s274 + $0x4] sm:$0xf]
      %s298 = scalar_lea.vmem %s274, 8
      %v299 = vld [vmem:[%s298] sm:$0xf]
      %v300 = vld [vmem:[%s298 + $0x4] sm:$0xf]
      %v303 = vunpack.c.l.b16 %v299
      %v304 = vunpack.c.l.b16 %v300
      %v305 = vpack.c.b16 %v304, %v303
      %307 = vst [vmem:[#allocation1] ss:$4 sm:$0xff] %v295
      %v308 = vld.sshfl [vmem:[#allocation1] sm:$0xff pattern:$0x73625140]
      %v310 = vld.sshfl [vmem:[#allocation1 + $0x8] sm:$0xff pattern:$0x73625140]
      %v312 = vld.sshfl [vmem:[#allocation1 + $0x10] sm:$0xff pattern:$0x73625140]
      %314 = vrot.lane.b32.xlu0 %v308, 127
      %v315 = vpop.permute.xlu0 %314
      %316 = vrot.lane.b32.xlu0 %v310, 127
      %v317 = vpop.permute.xlu0 %316
      %318 = vrot.lane.b32.xlu0 %v312, 127
      %v319 = vpop.permute.xlu0 %318
      %vm320 = vcmask 1039360
      %v321 = vsel %vm320, %v315, %v317
      %v322 = vsel %vm320, %v317, %v319
      %vm323 = vcmask 31744
      %v325 = vsel %vm323, %v305, 0
      %vm327 = vcmask 1041408
      %v329 = vsel %vm327, %v321, 0
      %v332 = vsel %vm327, %v322, 0
      %v335 = vsel %vm327, %v319, 0
      %337 = vmatpush.bf16.msra.mxu0 0
      %338 = vmatpush.bf16.msra.mxu0 0
      %339 = vmatpush.bf16.msra.mxu0 0
      %340 = vmatpush.bf16.msra.mxu0 0
      %341 = vmatpush.bf16.msra.mxu0 0
      %342 = vmatpush.bf16.msra.mxu0 0
      %343 = vmatpush.bf16.msra.mxu0 0
      %344 = vmatpush.bf16.msra.mxu0 %v329
      %345 = vmatmul.bf16.gmra.mxu0 %v325
      %v346 = vpop.f32.mrf.mxu0
      %v347 = vadd.f32 0.0, %v346
      %v348 = vpop.f32.mrf.mxu0
      %v349 = vadd.f32 0.0, %v348
      %350 = vdwg.mxu0
      %351 = vmatpush.bf16.msra.mxu0 0
      %352 = vmatpush.bf16.msra.mxu0 0
      %353 = vmatpush.bf16.msra.mxu0 0
      %354 = vmatpush.bf16.msra.mxu0 0
      %355 = vmatpush.bf16.msra.mxu0 0
      %356 = vmatpush.bf16.msra.mxu0 0
      %357 = vmatpush.bf16.msra.mxu0 0
      %358 = vmatpush.bf16.msra.mxu0 %v332
      %359 = vmatmul.bf16.gmra.mxu0 %v325
      %v360 = vpop.f32.mrf.mxu0
      %v361 = vadd.f32 0.0, %v360
      %v362 = vpop.f32.mrf.mxu0
      %v363 = vadd.f32 0.0, %v362
      %364 = vdwg.mxu0
      %365 = vmatpush.bf16.msra.mxu0 0
      %366 = vmatpush.bf16.msra.mxu0 0
      %367 = vmatpush.bf16.msra.mxu0 0
      %368 = vmatpush.bf16.msra.mxu0 0
      %369 = vmatpush.bf16.msra.mxu0 0
      %370 = vmatpush.bf16.msra.mxu0 0
      %371 = vmatpush.bf16.msra.mxu0 0
      %372 = vmatpush.bf16.msra.mxu0 %v335
      %373 = vmatmul.bf16.gmra.mxu0 %v325
      %v374 = vpop.f32.mrf.mxu0
      %v375 = vadd.f32 0.0, %v374
      %v376 = vpop.f32.mrf.mxu0
      %v377 = vadd.f32 0.0, %v376
      %378 = vdwg.mxu0
      %v381 = vunpack.c.l.b16 %v296
      %v382 = vunpack.c.l.b16 %v297
      %v383 = vpack.c.b16 %v382, %v381
      %384 = vst [vmem:[#allocation1] ss:$4 sm:$0xff] %v295
      %v385 = vld.sshfl [vmem:[#allocation1] sm:$0xff pattern:$0x73625140]
      %v386 = vld.sshfl [vmem:[#allocation1 + $0x8] sm:$0xff pattern:$0x73625140]
      %v387 = vld.sshfl [vmem:[#allocation1 + $0x10] sm:$0xff pattern:$0x73625140]
      %v389 = vsel %vm323, %v383, 0
      %v391 = vsel %vm327, %v385, 0
      %v393 = vsel %vm327, %v386, 0
      %v395 = vsel %vm327, %v387, 0
      %397 = vmatpush.bf16.msra.mxu0 0
      %398 = vmatpush.bf16.msra.mxu0 0
      %399 = vmatpush.bf16.msra.mxu0 0
      %400 = vmatpush.bf16.msra.mxu0 0
      %401 = vmatpush.bf16.msra.mxu0 0
      %402 = vmatpush.bf16.msra.mxu0 0
      %403 = vmatpush.bf16.msra.mxu0 0
      %404 = vmatpush.bf16.msra.mxu0 %v391
      %405 = vmatmul.bf16.gmra.mxu0 %v389
      %v406 = vpop.f32.mrf.mxu0
      %v407 = vadd.f32 %v347, %v406
      %v408 = vpop.f32.mrf.mxu0
      %v409 = vadd.f32 %v349, %v408
      %410 = vdwg.mxu0
      %411 = vmatpush.bf16.msra.mxu0 0
      %412 = vmatpush.bf16.msra.mxu0 0
      %413 = vmatpush.bf16.msra.mxu0 0
      %414 = vmatpush.bf16.msra.mxu0 0
      %415 = vmatpush.bf16.msra.mxu0 0
      %416 = vmatpush.bf16.msra.mxu0 0
      %417 = vmatpush.bf16.msra.mxu0 0
      %418 = vmatpush.bf16.msra.mxu0 %v393
      %419 = vmatmul.bf16.gmra.mxu0 %v389
      %v420 = vpop.f32.mrf.mxu0
      %v421 = vadd.f32 %v361, %v420
      %v422 = vpop.f32.mrf.mxu0
      %v423 = vadd.f32 %v363, %v422
      %424 = vdwg.mxu0
      %425 = vmatpush.bf16.msra.mxu0 0
      %426 = vmatpush.bf16.msra.mxu0 0
      %427 = vmatpush.bf16.msra.mxu0 0
      %428 = vmatpush.bf16.msra.mxu0 0
      %429 = vmatpush.bf16.msra.mxu0 0
      %430 = vmatpush.bf16.msra.mxu0 0
      %431 = vmatpush.bf16.msra.mxu0 0
      %432 = vmatpush.bf16.msra.mxu0 %v395
      %433 = vmatmul.bf16.gmra.mxu0 %v389
      %v434 = vpop.f32.mrf.mxu0
      %v435 = vadd.f32 %v375, %v434
      %v436 = vpop.f32.mrf.mxu0
      %v437 = vadd.f32 %v377, %v436
      %438 = vdwg.mxu0
      %v439 = vld [vmem:[%s269] sm:$0x3f]
      %s440 = scalar_lea.vmem %s274, 16
      %v441 = vld [vmem:[%s440] sm:$0xf]
      %v442 = vld [vmem:[%s440 + $0x4] sm:$0xf]
      %v445 = vunpack.c.l.b16 %v441
      %v446 = vunpack.c.l.b16 %v442
      %v447 = vpack.c.b16 %v446, %v445
      %449 = vst [vmem:[#allocation1] ss:$4 sm:$0xff] %v439
      %v450 = vld.sshfl [vmem:[#allocation1] sm:$0xff pattern:$0x73625140]
      %v452 = vld.sshfl [vmem:[#allocation1 + $0x8] sm:$0xff pattern:$0x73625140]
      %v454 = vld.sshfl [vmem:[#allocation1 + $0x10] sm:$0xff pattern:$0x73625140]
      %456 = vrot.lane.b32.xlu0 %v450, 126
      %v457 = vpop.permute.xlu0 %456
      %458 = vrot.lane.b32.xlu0 %v452, 126
      %v459 = vpop.permute.xlu0 %458
      %460 = vrot.lane.b32.xlu0 %v454, 126
      %v461 = vpop.permute.xlu0 %460
      %vm462 = vcmask 1031168
      %v463 = vsel %vm462, %v457, %v459
      %v464 = vsel %vm462, %v459, %v461
      %v466 = vsel %vm323, %v447, 0
      %v469 = vsel %vm327, %v463, 0
      %v472 = vsel %vm327, %v464, 0
      %v475 = vsel %vm327, %v461, 0
      %477 = vmatpush.bf16.msra.mxu0 0
      %478 = vmatpush.bf16.msra.mxu0 0
      %479 = vmatpush.bf16.msra.mxu0 0
      %480 = vmatpush.bf16.msra.mxu0 0
      %481 = vmatpush.bf16.msra.mxu0 0
      %482 = vmatpush.bf16.msra.mxu0 0
      %483 = vmatpush.bf16.msra.mxu0 0
      %484 = vmatpush.bf16.msra.mxu0 %v469
      %485 = vmatmul.bf16.gmra.mxu0 %v466
      %v486 = vpop.f32.mrf.mxu0
      %v487 = vadd.f32 0.0, %v486
      %v488 = vpop.f32.mrf.mxu0
      %v489 = vadd.f32 0.0, %v488
      %490 = vdwg.mxu0
      %491 = vmatpush.bf16.msra.mxu0 0
      %492 = vmatpush.bf16.msra.mxu0 0
      %493 = vmatpush.bf16.msra.mxu0 0
      %494 = vmatpush.bf16.msra.mxu0 0
      %495 = vmatpush.bf16.msra.mxu0 0
      %496 = vmatpush.bf16.msra.mxu0 0
      %497 = vmatpush.bf16.msra.mxu0 0
      %498 = vmatpush.bf16.msra.mxu0 %v472
      %499 = vmatmul.bf16.gmra.mxu0 %v466
      %v500 = vpop.f32.mrf.mxu0
      %v501 = vadd.f32 0.0, %v500
      %v502 = vpop.f32.mrf.mxu0
      %v503 = vadd.f32 0.0, %v502
      %504 = vdwg.mxu0
      %505 = vmatpush.bf16.msra.mxu0 0
      %506 = vmatpush.bf16.msra.mxu0 0
      %507 = vmatpush.bf16.msra.mxu0 0
      %508 = vmatpush.bf16.msra.mxu0 0
      %509 = vmatpush.bf16.msra.mxu0 0
      %510 = vmatpush.bf16.msra.mxu0 0
      %511 = vmatpush.bf16.msra.mxu0 0
      %512 = vmatpush.bf16.msra.mxu0 %v475
      %513 = vmatmul.bf16.gmra.mxu0 %v466
      %v514 = vpop.f32.mrf.mxu0
      %v515 = vadd.f32 0.0, %v514
      %v516 = vpop.f32.mrf.mxu0
      %v517 = vadd.f32 0.0, %v516
      %518 = vdwg.mxu0
      %v519 = vadd.f32 %v407, %v487
      %v520 = vadd.f32 %v421, %v501
      %v521 = vadd.f32 %v435, %v515
      %v522 = vadd.f32 %v409, %v489
      %v523 = vadd.f32 %v423, %v503
      %v524 = vadd.f32 %v437, %v517
      %v525 = vld [vmem:[%s269] sm:$0x3f]
      %s526 = scalar_lea.vmem %s274, 24
      %v527 = vld [vmem:[%s526] sm:$0xf]
      %v528 = vld [vmem:[%s526 + $0x4] sm:$0xf]
      %v531 = vunpack.c.l.b16 %v527
      %v532 = vunpack.c.l.b16 %v528
      %v533 = vpack.c.b16 %v532, %v531
      %535 = vst [vmem:[#allocation1] ss:$4 sm:$0xff] %v525
      %v536 = vld.sshfl [vmem:[#allocation1] sm:$0xff pattern:$0x73625140]
      %v538 = vld.sshfl [vmem:[#allocation1 + $0x8] sm:$0xff pattern:$0x73625140]
      %v540 = vld.sshfl [vmem:[#allocation1 + $0x10] sm:$0xff pattern:$0x73625140]
      %542 = vrot.lane.b32.xlu0 %v536, 110
      %v543 = vpop.permute.xlu0 %542
      %544 = vrot.lane.b32.xlu0 %v538, 110
      %v545 = vpop.permute.xlu0 %544
      %546 = vrot.lane.b32.xlu0 %v540, 110
      %v547 = vpop.permute.xlu0 %546
      %vm548 = vcmask 900096
      %v549 = vsel %vm548, %v543, %v545
      %v550 = vsel %vm548, %v545, %v547
      %v552 = vsel %vm323, %v533, 0
      %v555 = vsel %vm327, %v549, 0
      %v558 = vsel %vm327, %v550, 0
      %v561 = vsel %vm327, %v547, 0
      %563 = vmatpush.bf16.msra.mxu0 0
      %564 = vmatpush.bf16.msra.mxu0 0
      %565 = vmatpush.bf16.msra.mxu0 0
      %566 = vmatpush.bf16.msra.mxu0 0
      %567 = vmatpush.bf16.msra.mxu0 0
      %568 = vmatpush.bf16.msra.mxu0 0
      %569 = vmatpush.bf16.msra.mxu0 0
      %570 = vmatpush.bf16.msra.mxu0 %v555
      %571 = vmatmul.bf16.gmra.mxu0 %v552
      %v572 = vpop.f32.mrf.mxu0
      %v573 = vadd.f32 0.0, %v572
      %v574 = vpop.f32.mrf.mxu0
      %v575 = vadd.f32 0.0, %v574
      %576 = vdwg.mxu0
      %577 = vmatpush.bf16.msra.mxu0 0
      %578 = vmatpush.bf16.msra.mxu0 0
      %579 = vmatpush.bf16.msra.mxu0 0
      %580 = vmatpush.bf16.msra.mxu0 0
      %581 = vmatpush.bf16.msra.mxu0 0
      %582 = vmatpush.bf16.msra.mxu0 0
      %583 = vmatpush.bf16.msra.mxu0 0
      %584 = vmatpush.bf16.msra.mxu0 %v558
      %585 = vmatmul.bf16.gmra.mxu0 %v552
      %v586 = vpop.f32.mrf.mxu0
      %v587 = vadd.f32 0.0, %v586
      %v588 = vpop.f32.mrf.mxu0
      %v589 = vadd.f32 0.0, %v588
      %590 = vdwg.mxu0
      %591 = vmatpush.bf16.msra.mxu0 0
      %592 = vmatpush.bf16.msra.mxu0 0
      %593 = vmatpush.bf16.msra.mxu0 0
      %594 = vmatpush.bf16.msra.mxu0 0
      %595 = vmatpush.bf16.msra.mxu0 0
      %596 = vmatpush.bf16.msra.mxu0 0
      %597 = vmatpush.bf16.msra.mxu0 0
      %598 = vmatpush.bf16.msra.mxu0 %v561
      %599 = vmatmul.bf16.gmra.mxu0 %v552
      %v600 = vpop.f32.mrf.mxu0
      %v601 = vadd.f32 0.0, %v600
      %v602 = vpop.f32.mrf.mxu0
      %v603 = vadd.f32 0.0, %v602
      %604 = vdwg.mxu0
      %v605 = vadd.f32 %v519, %v573
      %v606 = vadd.f32 %v520, %v587
      %v607 = vadd.f32 %v521, %v601
      %v608 = vadd.f32 %v522, %v575
      %v609 = vadd.f32 %v523, %v589
      %v610 = vadd.f32 %v524, %v603
      %v611 = vld [vmem:[%s269] sm:$0x3f]
      %s612 = scalar_lea.vmem %s274, 32
      %v613 = vld [vmem:[%s612] sm:$0xf]
      %v614 = vld [vmem:[%s612 + $0x4] sm:$0xf]
      %v617 = vunpack.c.l.b16 %v613
      %v618 = vunpack.c.l.b16 %v614
      %v619 = vpack.c.b16 %v618, %v617
      %621 = vst [vmem:[#allocation1] ss:$4 sm:$0xff] %v611
      %v622 = vld.sshfl [vmem:[#allocation1] sm:$0xff pattern:$0x73625140]
      %v624 = vld.sshfl [vmem:[#allocation1 + $0x8] sm:$0xff pattern:$0x73625140]
      %v626 = vld.sshfl [vmem:[#allocation1 + $0x10] sm:$0xff pattern:$0x73625140]
      %628 = vrot.lane.b32.xlu0 %v622, 109
      %v629 = vpop.permute.xlu0 %628
      %630 = vrot.lane.b32.xlu0 %v624, 109
      %v631 = vpop.permute.xlu0 %630
      %632 = vrot.lane.b32.xlu0 %v626, 109
      %v633 = vpop.permute.xlu0 %632
      %vm634 = vcmask 891904
      %v635 = vsel %vm634, %v629, %v631
      %v636 = vsel %vm634, %v631, %v633
      %v638 = vsel %vm323, %v619, 0
      %v641 = vsel %vm327, %v635, 0
      %v644 = vsel %vm327, %v636, 0
      %v647 = vsel %vm327, %v633, 0
      %649 = vmatpush.bf16.msra.mxu0 0
      %650 = vmatpush.bf16.msra.mxu0 0
      %651 = vmatpush.bf16.msra.mxu0 0
      %652 = vmatpush.bf16.msra.mxu0 0
      %653 = vmatpush.bf16.msra.mxu0 0
      %654 = vmatpush.bf16.msra.mxu0 0
      %655 = vmatpush.bf16.msra.mxu0 0
      %656 = vmatpush.bf16.msra.mxu0 %v641
      %657 = vmatmul.bf16.gmra.mxu0 %v638
      %v658 = vpop.f32.mrf.mxu0
      %v659 = vadd.f32 0.0, %v658
      %v660 = vpop.f32.mrf.mxu0
      %v661 = vadd.f32 0.0, %v660
      %662 = vdwg.mxu0
      %663 = vmatpush.bf16.msra.mxu0 0
      %664 = vmatpush.bf16.msra.mxu0 0
      %665 = vmatpush.bf16.msra.mxu0 0
      %666 = vmatpush.bf16.msra.mxu0 0
      %667 = vmatpush.bf16.msra.mxu0 0
      %668 = vmatpush.bf16.msra.mxu0 0
      %669 = vmatpush.bf16.msra.mxu0 0
      %670 = vmatpush.bf16.msra.mxu0 %v644
      %671 = vmatmul.bf16.gmra.mxu0 %v638
      %v672 = vpop.f32.mrf.mxu0
      %v673 = vadd.f32 0.0, %v672
      %v674 = vpop.f32.mrf.mxu0
      %v675 = vadd.f32 0.0, %v674
      %676 = vdwg.mxu0
      %677 = vmatpush.bf16.msra.mxu0 0
      %678 = vmatpush.bf16.msra.mxu0 0
      %679 = vmatpush.bf16.msra.mxu0 0
      %680 = vmatpush.bf16.msra.mxu0 0
      %681 = vmatpush.bf16.msra.mxu0 0
      %682 = vmatpush.bf16.msra.mxu0 0
      %683 = vmatpush.bf16.msra.mxu0 0
      %684 = vmatpush.bf16.msra.mxu0 %v647
      %685 = vmatmul.bf16.gmra.mxu0 %v638
      %v686 = vpop.f32.mrf.mxu0
      %v687 = vadd.f32 0.0, %v686
      %v688 = vpop.f32.mrf.mxu0
      %v689 = vadd.f32 0.0, %v688
      %690 = vdwg.mxu0
      %v691 = vadd.f32 %v605, %v659
      %v692 = vadd.f32 %v606, %v673
      %v693 = vadd.f32 %v607, %v687
      %v694 = vadd.f32 %v608, %v661
      %v695 = vadd.f32 %v609, %v675
      %v696 = vadd.f32 %v610, %v689
      %v697 = vld [vmem:[%s269] sm:$0x3f]
      %s698 = scalar_lea.vmem %s274, 40
      %v699 = vld [vmem:[%s698] sm:$0xf]
      %v700 = vld [vmem:[%s698 + $0x4] sm:$0xf]
      %v703 = vunpack.c.l.b16 %v699
      %v704 = vunpack.c.l.b16 %v700
      %v705 = vpack.c.b16 %v704, %v703
      %707 = vst [vmem:[#allocation1] ss:$4 sm:$0xff] %v697
      %v708 = vld.sshfl [vmem:[#allocation1] sm:$0xff pattern:$0x73625140]
      %v710 = vld.sshfl [vmem:[#allocation1 + $0x8] sm:$0xff pattern:$0x73625140]
      %v712 = vld.sshfl [vmem:[#allocation1 + $0x10] sm:$0xff pattern:$0x73625140]
      %714 = vrot.lane.b32.xlu0 %v708, 108
      %v715 = vpop.permute.xlu0 %714
      %716 = vrot.lane.b32.xlu0 %v710, 108
      %v717 = vpop.permute.xlu0 %716
      %718 = vrot.lane.b32.xlu0 %v712, 108
      %v719 = vpop.permute.xlu0 %718
      %vm720 = vcmask 883712
      %v721 = vsel %vm720, %v715, %v717
      %v722 = vsel %vm720, %v717, %v719
      %v724 = vsel %vm323, %v705, 0
      %v727 = vsel %vm327, %v721, 0
      %v730 = vsel %vm327, %v722, 0
      %v733 = vsel %vm327, %v719, 0
      %735 = vmatpush.bf16.msra.mxu0 0
      %736 = vmatpush.bf16.msra.mxu0 0
      %737 = vmatpush.bf16.msra.mxu0 0
      %738 = vmatpush.bf16.msra.mxu0 0
      %739 = vmatpush.bf16.msra.mxu0 0
      %740 = vmatpush.bf16.msra.mxu0 0
      %741 = vmatpush.bf16.msra.mxu0 0
      %742 = vmatpush.bf16.msra.mxu0 %v727
      %743 = vmatmul.bf16.gmra.mxu0 %v724
      %v744 = vpop.f32.mrf.mxu0
      %v745 = vadd.f32 0.0, %v744
      %v746 = vpop.f32.mrf.mxu0
      %v747 = vadd.f32 0.0, %v746
      %748 = vdwg.mxu0
      %749 = vmatpush.bf16.msra.mxu0 0
      %750 = vmatpush.bf16.msra.mxu0 0
      %751 = vmatpush.bf16.msra.mxu0 0
      %752 = vmatpush.bf16.msra.mxu0 0
      %753 = vmatpush.bf16.msra.mxu0 0
      %754 = vmatpush.bf16.msra.mxu0 0
      %755 = vmatpush.bf16.msra.mxu0 0
      %756 = vmatpush.bf16.msra.mxu0 %v730
      %757 = vmatmul.bf16.gmra.mxu0 %v724
      %v758 = vpop.f32.mrf.mxu0
      %v759 = vadd.f32 0.0, %v758
      %v760 = vpop.f32.mrf.mxu0
      %v761 = vadd.f32 0.0, %v760
      %762 = vdwg.mxu0
      %763 = vmatpush.bf16.msra.mxu0 0
      %764 = vmatpush.bf16.msra.mxu0 0
      %765 = vmatpush.bf16.msra.mxu0 0
      %766 = vmatpush.bf16.msra.mxu0 0
      %767 = vmatpush.bf16.msra.mxu0 0
      %768 = vmatpush.bf16.msra.mxu0 0
      %769 = vmatpush.bf16.msra.mxu0 0
      %770 = vmatpush.bf16.msra.mxu0 %v733
      %771 = vmatmul.bf16.gmra.mxu0 %v724
      %v772 = vpop.f32.mrf.mxu0
      %v773 = vadd.f32 0.0, %v772
      %v774 = vpop.f32.mrf.mxu0
      %v775 = vadd.f32 0.0, %v774
      %776 = vdwg.mxu0
      %v777 = vadd.f32 %v691, %v745
      %v778 = vadd.f32 %v692, %v759
      %v779 = vadd.f32 %v693, %v773
      %v780 = vadd.f32 %v694, %v747
      %v781 = vadd.f32 %v695, %v761
      %v782 = vadd.f32 %v696, %v775
      %v783 = vld [vmem:[%s269] sm:$0x3f]
      %s784 = scalar_lea.vmem %s274, 48
      %v785 = vld [vmem:[%s784] sm:$0xf]
      %v786 = vld [vmem:[%s784 + $0x4] sm:$0xf]
      %v789 = vunpack.c.l.b16 %v785
      %v790 = vunpack.c.l.b16 %v786
      %v791 = vpack.c.b16 %v790, %v789
      %793 = vst [vmem:[#allocation1] ss:$4 sm:$0xff] %v783
      %v794 = vld.sshfl [vmem:[#allocation1] sm:$0xff pattern:$0x73625140]
      %v796 = vld.sshfl [vmem:[#allocation1 + $0x8] sm:$0xff pattern:$0x73625140]
      %v798 = vld.sshfl [vmem:[#allocation1 + $0x10] sm:$0xff pattern:$0x73625140]
      %800 = vrot.lane.b32.xlu0 %v794, 92
      %v801 = vpop.permute.xlu0 %800
      %802 = vrot.lane.b32.xlu0 %v796, 92
      %v803 = vpop.permute.xlu0 %802
      %804 = vrot.lane.b32.xlu0 %v798, 92
      %v805 = vpop.permute.xlu0 %804
      %vm806 = vcmask 752640
      %v807 = vsel %vm806, %v801, %v803
      %v808 = vsel %vm806, %v803, %v805
      %v810 = vsel %vm323, %v791, 0
      %v813 = vsel %vm327, %v807, 0
      %v816 = vsel %vm327, %v808, 0
      %v819 = vsel %vm327, %v805, 0
      %821 = vmatpush.bf16.msra.mxu0 0
      %822 = vmatpush.bf16.msra.mxu0 0
      %823 = vmatpush.bf16.msra.mxu0 0
      %824 = vmatpush.bf16.msra.mxu0 0
      %825 = vmatpush.bf16.msra.mxu0 0
      %826 = vmatpush.bf16.msra.mxu0 0
      %827 = vmatpush.bf16.msra.mxu0 0
      %828 = vmatpush.bf16.msra.mxu0 %v813
      %829 = vmatmul.bf16.gmra.mxu0 %v810
      %v830 = vpop.f32.mrf.mxu0
      %v831 = vadd.f32 0.0, %v830
      %v832 = vpop.f32.mrf.mxu0
      %v833 = vadd.f32 0.0, %v832
      %834 = vdwg.mxu0
      %835 = vmatpush.bf16.msra.mxu0 0
      %836 = vmatpush.bf16.msra.mxu0 0
      %837 = vmatpush.bf16.msra.mxu0 0
      %838 = vmatpush.bf16.msra.mxu0 0
      %839 = vmatpush.bf16.msra.mxu0 0
      %840 = vmatpush.bf16.msra.mxu0 0
      %841 = vmatpush.bf16.msra.mxu0 0
      %842 = vmatpush.bf16.msra.mxu0 %v816
      %843 = vmatmul.bf16.gmra.mxu0 %v810
      %v844 = vpop.f32.mrf.mxu0
      %v845 = vadd.f32 0.0, %v844
      %v846 = vpop.f32.mrf.mxu0
      %v847 = vadd.f32 0.0, %v846
      %848 = vdwg.mxu0
      %849 = vmatpush.bf16.msra.mxu0 0
      %850 = vmatpush.bf16.msra.mxu0 0
      %851 = vmatpush.bf16.msra.mxu0 0
      %852 = vmatpush.bf16.msra.mxu0 0
      %853 = vmatpush.bf16.msra.mxu0 0
      %854 = vmatpush.bf16.msra.mxu0 0
      %855 = vmatpush.bf16.msra.mxu0 0
      %856 = vmatpush.bf16.msra.mxu0 %v819
      %857 = vmatmul.bf16.gmra.mxu0 %v810
      %v858 = vpop.f32.mrf.mxu0
      %v859 = vadd.f32 0.0, %v858
      %v860 = vpop.f32.mrf.mxu0
      %v861 = vadd.f32 0.0, %v860
      %862 = vdwg.mxu0
      %v863 = vadd.f32 %v777, %v831
      %v864 = vadd.f32 %v778, %v845
      %v865 = vadd.f32 %v779, %v859
      %v866 = vadd.f32 %v780, %v833
      %v867 = vadd.f32 %v781, %v847
      %v868 = vadd.f32 %v782, %v861
      %v869 = vld [vmem:[%s269] sm:$0x3f]
      %s870 = scalar_lea.vmem %s274, 56
      %v871 = vld [vmem:[%s870] sm:$0xf]
      %v872 = vld [vmem:[%s870 + $0x4] sm:$0xf]
      %v875 = vunpack.c.l.b16 %v871
      %v876 = vunpack.c.l.b16 %v872
      %v877 = vpack.c.b16 %v876, %v875
      %879 = vst [vmem:[#allocation1] ss:$4 sm:$0xff] %v869
      %v880 = vld.sshfl [vmem:[#allocation1] sm:$0xff pattern:$0x73625140]
      %v882 = vld.sshfl [vmem:[#allocation1 + $0x8] sm:$0xff pattern:$0x73625140]
      %v884 = vld.sshfl [vmem:[#allocation1 + $0x10] sm:$0xff pattern:$0x73625140]
      %886 = vrot.lane.b32.xlu0 %v880, 91
      %v887 = vpop.permute.xlu0 %886
      %888 = vrot.lane.b32.xlu0 %v882, 91
      %v889 = vpop.permute.xlu0 %888
      %890 = vrot.lane.b32.xlu0 %v884, 91
      %v891 = vpop.permute.xlu0 %890
      %vm892 = vcmask 744448
      %v893 = vsel %vm892, %v887, %v889
      %v894 = vsel %vm892, %v889, %v891
      %v896 = vsel %vm323, %v877, 0
      %v899 = vsel %vm327, %v893, 0
      %v902 = vsel %vm327, %v894, 0
      %v905 = vsel %vm327, %v891, 0
      %907 = vmatpush.bf16.msra.mxu0 0
      %908 = vmatpush.bf16.msra.mxu0 0
      %909 = vmatpush.bf16.msra.mxu0 0
      %910 = vmatpush.bf16.msra.mxu0 0
      %911 = vmatpush.bf16.msra.mxu0 0
      %912 = vmatpush.bf16.msra.mxu0 0
      %913 = vmatpush.bf16.msra.mxu0 0
      %914 = vmatpush.bf16.msra.mxu0 %v899
      %915 = vmatmul.bf16.gmra.mxu0 %v896
      %v916 = vpop.f32.mrf.mxu0
      %v917 = vadd.f32 0.0, %v916
      %v918 = vpop.f32.mrf.mxu0
      %v919 = vadd.f32 0.0, %v918
      %920 = vdwg.mxu0
      %921 = vmatpush.bf16.msra.mxu0 0
      %922 = vmatpush.bf16.msra.mxu0 0
      %923 = vmatpush.bf16.msra.mxu0 0
      %924 = vmatpush.bf16.msra.mxu0 0
      %925 = vmatpush.bf16.msra.mxu0 0
      %926 = vmatpush.bf16.msra.mxu0 0
      %927 = vmatpush.bf16.msra.mxu0 0
      %928 = vmatpush.bf16.msra.mxu0 %v902
      %929 = vmatmul.bf16.gmra.mxu0 %v896
      %v930 = vpop.f32.mrf.mxu0
      %v931 = vadd.f32 0.0, %v930
      %v932 = vpop.f32.mrf.mxu0
      %v933 = vadd.f32 0.0, %v932
      %934 = vdwg.mxu0
      %935 = vmatpush.bf16.msra.mxu0 0
      %936 = vmatpush.bf16.msra.mxu0 0
      %937 = vmatpush.bf16.msra.mxu0 0
      %938 = vmatpush.bf16.msra.mxu0 0
      %939 = vmatpush.bf16.msra.mxu0 0
      %940 = vmatpush.bf16.msra.mxu0 0
      %941 = vmatpush.bf16.msra.mxu0 0
      %942 = vmatpush.bf16.msra.mxu0 %v905
      %943 = vmatmul.bf16.gmra.mxu0 %v896
      %v944 = vpop.f32.mrf.mxu0
      %v945 = vadd.f32 0.0, %v944
      %v946 = vpop.f32.mrf.mxu0
      %v947 = vadd.f32 0.0, %v946
      %948 = vdwg.mxu0
      %v949 = vadd.f32 %v863, %v917
      %v950 = vadd.f32 %v864, %v931
      %v951 = vadd.f32 %v865, %v945
      %v952 = vadd.f32 %v866, %v919
      %v953 = vadd.f32 %v867, %v933
      %v954 = vadd.f32 %v868, %v947
      %v955 = vld [vmem:[%s269] sm:$0x3f]
      %s956 = scalar_lea.vmem %s274, 64
      %v957 = vld [vmem:[%s956] sm:$0xf]
      %v958 = vld [vmem:[%s956 + $0x4] sm:$0xf]
      %v961 = vunpack.c.l.b16 %v957
      %v962 = vunpack.c.l.b16 %v958
      %v963 = vpack.c.b16 %v962, %v961
      %965 = vst [vmem:[#allocation1] ss:$4 sm:$0xff] %v955
      %v966 = vld.sshfl [vmem:[#allocation1] sm:$0xff pattern:$0x73625140]
      %v968 = vld.sshfl [vmem:[#allocation1 + $0x8] sm:$0xff pattern:$0x73625140]
      %v970 = vld.sshfl [vmem:[#allocation1 + $0x10] sm:$0xff pattern:$0x73625140]
      %972 = vrot.lane.b32.xlu0 %v966, 90
      %v973 = vpop.permute.xlu0 %972
      %974 = vrot.lane.b32.xlu0 %v968, 90
      %v975 = vpop.permute.xlu0 %974
      %976 = vrot.lane.b32.xlu0 %v970, 90
      %v977 = vpop.permute.xlu0 %976
      %vm978 = vcmask 736256
      %v979 = vsel %vm978, %v973, %v975
      %v980 = vsel %vm978, %v975, %v977
      %v982 = vsel %vm323, %v963, 0
      %v985 = vsel %vm327, %v979, 0
      %v988 = vsel %vm327, %v980, 0
      %v991 = vsel %vm327, %v977, 0
      %993 = vmatpush.bf16.msra.mxu0 0
      %994 = vmatpush.bf16.msra.mxu0 0
      %995 = vmatpush.bf16.msra.mxu0 0
      %996 = vmatpush.bf16.msra.mxu0 0
      %997 = vmatpush.bf16.msra.mxu0 0
      %998 = vmatpush.bf16.msra.mxu0 0
      %999 = vmatpush.bf16.msra.mxu0 0
      %1000 = vmatpush.bf16.msra.mxu0 %v985
      %1001 = vmatmul.bf16.gmra.mxu0 %v982
      %v1002 = vpop.f32.mrf.mxu0
      %v1003 = vadd.f32 0.0, %v1002
      %v1004 = vpop.f32.mrf.mxu0
      %v1005 = vadd.f32 0.0, %v1004
      %1006 = vdwg.mxu0
      %1007 = vmatpush.bf16.msra.mxu0 0
      %1008 = vmatpush.bf16.msra.mxu0 0
      %1009 = vmatpush.bf16.msra.mxu0 0
      %1010 = vmatpush.bf16.msra.mxu0 0
      %1011 = vmatpush.bf16.msra.mxu0 0
      %1012 = vmatpush.bf16.msra.mxu0 0
      %1013 = vmatpush.bf16.msra.mxu0 0
      %1014 = vmatpush.bf16.msra.mxu0 %v988
      %1015 = vmatmul.bf16.gmra.mxu0 %v982
      %v1016 = vpop.f32.mrf.mxu0
      %v1017 = vadd.f32 0.0, %v1016
      %v1018 = vpop.f32.mrf.mxu0
      %v1019 = vadd.f32 0.0, %v1018
      %1020 = vdwg.mxu0
      %1021 = vmatpush.bf16.msra.mxu0 0
      %1022 = vmatpush.bf16.msra.mxu0 0
      %1023 = vmatpush.bf16.msra.mxu0 0
      %1024 = vmatpush.bf16.msra.mxu0 0
      %1025 = vmatpush.bf16.msra.mxu0 0
      %1026 = vmatpush.bf16.msra.mxu0 0
      %1027 = vmatpush.bf16.msra.mxu0 0
      %1028 = vmatpush.bf16.msra.mxu0 %v991
      %1029 = vmatmul.bf16.gmra.mxu0 %v982
      %v1030 = vpop.f32.mrf.mxu0
      %v1031 = vadd.f32 0.0, %v1030
      %v1032 = vpop.f32.mrf.mxu0
      %v1033 = vadd.f32 0.0, %v1032
      %1034 = vdwg.mxu0
      %v1035 = vadd.f32 %v949, %v1003
      %v1036 = vadd.f32 %v950, %v1017
      %v1037 = vadd.f32 %v951, %v1031
      %v1038 = vadd.f32 %v952, %v1005
      %v1039 = vadd.f32 %v953, %v1019
      %v1040 = vadd.f32 %v954, %v1033
      %v1041 = vld [vmem:[%s279] sm:$0xff]
      %v1042 = vld [vmem:[%s279 + $0x8] sm:$0xff]
      %1044 = vset.pattern.permute.xlu0 0
      %1045 = vperm.xlu0 %1044, %v1041
      %v1046 = vpop.permute.xlu0 %1045
      %1049 = vset.pattern.permute.xlu0 0
      %1050 = vperm.xlu0 %1049, %v1042
      %v1051 = vpop.permute.xlu0 %1050
      %v1053 = vadd.f32 %v1035, %v1046
      %v1054 = vadd.f32 %v1036, %v1046
      %v1055 = vadd.f32 %v1037, %v1046
      %v1056 = vadd.f32 %v1038, %v1051
      %v1057 = vadd.f32 %v1039, %v1051
      %v1058 = vadd.f32 %v1040, %v1051
      %vm1059 = vcmp.gt.f32.partialorder %v1053, 0.0
      %vm1060 = vcmp.gt.f32.partialorder %v1054, 0.0
      %vm1061 = vcmp.gt.f32.partialorder %v1055, 0.0
      %vm1062 = vcmp.gt.f32.partialorder %v1056, 0.0
      %vm1063 = vcmp.gt.f32.partialorder %v1057, 0.0
      %vm1064 = vcmp.gt.f32.partialorder %v1058, 0.0
      %v1065 = vld [vmem:[%s284] sm:$0xff]
      %v1066 = vld [vmem:[%s284 + $0x8] sm:$0xff]
      %1068 = vset.pattern.permute.xlu0 0
      %1069 = vperm.xlu0 %1068, %v1065
      %v1070 = vpop.permute.xlu0 %1069
      %1073 = vset.pattern.permute.xlu0 0
      %1074 = vperm.xlu0 %1073, %v1066
      %v1075 = vpop.permute.xlu0 %1074
      %v1077 = vmul.f32 %v1070, %v1053
      %v1078 = vmul.f32 %v1070, %v1054
      %v1079 = vmul.f32 %v1070, %v1055
      %v1080 = vmul.f32 %v1075, %v1056
      %v1081 = vmul.f32 %v1075, %v1057
      %v1082 = vmul.f32 %v1075, %v1058
      %v1083 = vsel %vm1059, %v1053, %v1077
      %v1084 = vsel %vm1060, %v1054, %v1078
      %v1085 = vsel %vm1061, %v1055, %v1079
      %v1086 = vsel %vm1062, %v1056, %v1080
      %v1087 = vsel %vm1063, %v1057, %v1081
      %v1088 = vsel %vm1064, %v1058, %v1082
      %v1089 = vpack.c.bf16 %v1084, %v1083
      %v1090 = vpack.c.bf16 %v1085, %v1085
      %v1091 = vpack.c.bf16 %v1087, %v1086
      %v1092 = vpack.c.bf16 %v1088, %v1088
      %1093 = vst [vmem:[%s293] sm:$0xff] %v1089
      %vm1094 = vcmask 257024
      %1095 = vst.msk [vmem:[%s293 + $0x8] sm:$0xf] %vm1094, %v1090
      %1096 = vst [vmem:[%s293 + $0xc] sm:$0xff] %v1091
      %1097 = vst.msk [vmem:[%s293 + $0x14] sm:$0xf] %vm1094, %v1092
      %p1098 = scmp.lt.s32.totalorder %s19, 2
      %s1099 = scalar_select %p1098, %s19, 2
      %p1100 = scmp.lt.s32.totalorder %s20, 1
      %s1101 = scalar_select %p1100, %s20, 1
      %s1102 = smul.addr %s1101, 6
      %s1103 = smul.addr %s1099, 12
      %s1104 = sadd.s32 %s1102, %s1103
      %s1105 = smul.addr %s1104, 4
      %s1106 = scalar_lea.vmem %s4, %s1105
      // Predicated region
      $region37: #{_fused_forward.1} parent=35 // pred_check
        %p1107 = pneg %p153
      $region38: #{_fused_forward.1} parent=35 // pred_check_branch
        %1109 = sbr.rel (%p1107) target = $region40
      $region39: #{_fused_forward.1} parent=35 // pred_region
        _
      $region40: #{_fused_forward.1} parent=35 // pred_fallthru
        _
    $region36: #{_fused_forward.1} parent=5 // pred_fallthru
      _
    %p1110 = scmp.le.s32.totalorder 2, %s10
    // Predicated region
    $region41: #{_fused_forward.1} parent=5 // pred_check
      %p1111 = pneg %p1110
    $region42: #{_fused_forward.1} parent=5 // pred_check_branch
      %1113 = sbr.rel (%p1111) target = $region44
    $region43: #{_fused_forward.1} parent=5 // pred_region
      %s1114 = ssub.s32 %s10, 2
      // Predicated region
      $region45: #{_fused_forward.1} parent=43 // pred_check
        %p1115 = pneg %p159
      $region46: #{_fused_forward.1} parent=43 // pred_check_branch
        %1117 = sbr.rel (%p1115) target = $region48
      $region47: #{_fused_forward.1} parent=43 // pred_region
        %p1118 = scmp.lt.s32.totalorder %s21, 2
        %s1119 = scalar_select %p1118, %s21, 2
        %p1120 = scmp.lt.s32.totalorder %s22, 1
        %s1121 = scalar_select %p1120, %s22, 1
        %s1122 = smul.addr %s1121, 6
        %s1123 = smul.addr %s1119, 12
        %s1124 = sadd.s32 %s1122, %s1123
        %s1125 = smul.addr %s1124, 4
        %s1126 = scalar_lea.vmem %s4, %s1125
      $region48: #{_fused_forward.1} parent=43 // pred_fallthru
        _
    $region44: #{_fused_forward.1} parent=5 // pred_fallthru
      _
  $region6: #{_fused_forward.1} parent=0 // loop_footer
    %s14 = sadd.s32 1, %s10
  $region7: #{_fused_forward.1} parent=0 // loop_footer_branch
    %9 = sbr.rel target = $region3
  $region8: #{_fused_forward.1} parent=0 // loop_exit
    _

</llo_original>
